<compile_context>
chip_gen: v5e
topology: v5e:2x2
jax: 0.10.0
libtpu: 0.0.40
codegen_flags: <defaults>
</compile_context>

<pallas_src>
import functools

import jax
import jax.numpy as jnp
from jax.experimental import pallas as pl
from jax.experimental.pallas import tpu as pltpu


# ---------------------------------------------------------------------------
# Pallas kernel: one (batch element, L-tile)
#   x_ref     : (C, TL)  input tile (activation dtype, batch dim squeezed)
#   gamma_ref : (C, C)   non-negative channel-mixing matrix, bf16, resident
#   beta_ref  : (C, 1)   non-negative bias, f32, resident
#   o_ref     : (C, TL)  output tile (activation dtype)
# ---------------------------------------------------------------------------
def gdn_kernel(x_ref, gamma_ref, beta_ref, o_ref, *, inverse: bool):
    x = x_ref[...]                                      # (C, TL), activation dtype
    # Square in the activation dtype, feed the MXU in bf16 (single-pass),
    # accumulate in f32 via preferred_element_type.
    x2 = (x * x).astype(jnp.bfloat16)                   # (C, TL) bf16
    norm = jnp.dot(gamma_ref[...], x2,
                   preferred_element_type=jnp.float32)  # (C, TL) f32, MXU
    norm = norm + beta_ref[...]                         # (C, 1) f32 broadcast
    if inverse:
        scale = jnp.sqrt(norm)
    else:
        scale = jax.lax.rsqrt(norm)                     # EUP rsqrt
    # Normalize in the activation dtype (no live f32 copy of x needed).
    o_ref[...] = (x * scale.astype(x.dtype)).astype(o_ref.dtype)


# ---------------------------------------------------------------------------
# Tile-size policy
# ---------------------------------------------------------------------------
def _choose_tile_l(n, c, l, itemsize, *, max_tile_bytes=4 << 20,
                   max_tile_elems=3 << 19, min_total_steps=8):
    """Pick a lane tile TL: multiple of 128 (or == L), ~4 MiB of input/step."""
    budget = min(max_tile_bytes // (c * itemsize), max_tile_elems // c)
    budget = max(128, (budget // 128) * 128)
    tl = l if l <= budget else budget                  # == L is always legal
    # Keep the grid deep enough for pipelining / v7x dual-core sharding.
    while n * pl.cdiv(l, tl) < min_total_steps and tl > 128:
        new_tl = max(128, (tl // 2 // 128) * 128)
        if new_tl == tl:
            break
        tl = new_tl
    return tl


def gdn_1d_pallas(x, gamma, beta, *, inverse: bool = False,
                  max_tile_bytes: int = 4 << 20):
    """GDN forward.  x: (N, C, L) f32/bf16, gamma: (C, C), beta: (C,)."""
    N, C, L = x.shape
    itemsize = jnp.dtype(x.dtype).itemsize

    TL = _choose_tile_l(N, C, L, itemsize, max_tile_bytes=max_tile_bytes)
    num_l = pl.cdiv(L, TL)                             # ragged last tile is masked

    gamma_bf16 = gamma.astype(jnp.bfloat16)            # MXU operand (resident)
    beta_col = beta.reshape(C, 1).astype(jnp.float32)  # f32 bias (resident)

    kernel = functools.partial(gdn_kernel, inverse=inverse)

    cost = pl.CostEstimate(
        flops=2 * N * C * C * L + 3 * N * C * L,
        transcendentals=N * C * L,
        bytes_accessed=2 * N * C * L * itemsize + C * C * 2 + C * 4,
    )

    def build(single_buffer_consts: bool):
        resident_kwargs = (dict(pipeline_mode=pl.Buffered(1))
                           if single_buffer_consts else {})
        x_spec = pl.BlockSpec((pl.Squeezed(), C, TL), lambda n, l: (n, 0, l))
        gamma_spec = pl.BlockSpec((C, C), lambda n, l: (0, 0), **resident_kwargs)
        beta_spec = pl.BlockSpec((C, 1), lambda n, l: (0, 0), **resident_kwargs)
        out_spec = pl.BlockSpec((pl.Squeezed(), C, TL), lambda n, l: (n, 0, l))
        return pl.pallas_call(
            kernel,
            out_shape=jax.ShapeDtypeStruct((N, C, L), x.dtype),
            grid_spec=pltpu.PrefetchScalarGridSpec(
                num_scalar_prefetch=0,
                grid=(N, num_l),
                in_specs=[x_spec, gamma_spec, beta_spec],
                out_specs=out_spec,
            ),
            compiler_params=pltpu.CompilerParams(
                dimension_semantics=("parallel", "parallel"),
                # 48 MiB: comfortably fits 2x in + 2x out tiles + f32
                # intermediates; stays under v7x's 64 MiB physical VMEM.
                vmem_limit_bytes=48 * 1024 * 1024,
            ),
            cost_estimate=cost,
        )

    try:
        return build(True)(x, gamma_bf16, beta_col)
    except Exception:
        # pipeline_mode=pl.Buffered(1) not supported by this JAX/Mosaic build;
        # fall back to default double-buffered resident operands.
        return build(False)(x, gamma_bf16, beta_col)


# ---------------------------------------------------------------------------
# Parameter setup (plain JAX glue) — mirrors compressai's NonNegativeParametrizer
#   init(x)    = sqrt(max(x + pedestal, pedestal))
#   forward(x) = max(x, bound)**2 - pedestal,   bound = sqrt(minimum + pedestal)
# with pedestal = reparam_offset**2, reparam_offset = 2**-18.
# ---------------------------------------------------------------------------
_REPARAM_OFFSET = 2.0 ** -18
_PEDESTAL = _REPARAM_OFFSET ** 2


def _nonneg_init(x):
    return jnp.sqrt(jnp.maximum(x + _PEDESTAL, _PEDESTAL))


def _nonneg_forward(x, minimum=0.0):
    bound = (minimum + _PEDESTAL) ** 0.5
    return jnp.maximum(x, bound) ** 2 - _PEDESTAL


def make_gdn_params(in_channels: int, beta_min: float = 1e-6,
                    gamma_init: float = 0.1):
    # deterministic init, identical to GDN_1d.__init__
    beta_stored = _nonneg_init(jnp.ones((in_channels,), jnp.float32))
    gamma_stored = _nonneg_init(gamma_init * jnp.eye(in_channels, dtype=jnp.float32))
    # reparametrize (what forward() applies before the conv)
    beta = _nonneg_forward(beta_stored, minimum=beta_min)          # (C,)
    gamma = _nonneg_forward(gamma_stored, minimum=0.0)             # (C, C)
    return gamma, beta


def gdn_1d_reference(x, gamma, beta, *, inverse=False):
    # pure-JAX (f32) reference of the PyTorch forward
    xf = x.astype(jnp.float32)
    norm = jnp.einsum('ij,njl->nil', gamma.astype(jnp.float32), xf * xf)
    norm = norm + beta.astype(jnp.float32)[None, :, None]
    scale = jnp.sqrt(norm) if inverse else jax.lax.rsqrt(norm)
    return (xf * scale).astype(x.dtype)


if __name__ == "__main__":
    key = jax.random.PRNGKey(0)
    k1, k2, k3 = jax.random.split(key, 3)

    # ---- test 1: default GDN params, f32 activations, tiny shape -----------
    N, C, L = 2, 4, 16
    x = jax.random.normal(k1, (N, C, L), dtype=jnp.float32)
    gamma, beta = make_gdn_params(C)

    out = jax.block_until_ready(gdn_1d_pallas(x, gamma, beta, inverse=False))
    ref = gdn_1d_reference(x, gamma, beta, inverse=False)
    assert out.shape == (N, C, L) and out.dtype == x.dtype
    # bf16 MXU operands (f32 accumulation) -> loosened tolerance vs f32 ref.
    assert jnp.allclose(out, ref, atol=2e-2, rtol=2e-2), "GDN mismatch vs reference"

    out_inv = jax.block_until_ready(gdn_1d_pallas(x, gamma, beta, inverse=True))
    ref_inv = gdn_1d_reference(x, gamma, beta, inverse=True)
    assert jnp.allclose(out_inv, ref_inv, atol=2e-2, rtol=2e-2), "IGDN mismatch vs reference"

    # ---- test 2: non-symmetric gamma, bf16 activations, ragged L -----------
    # (exercises the no-pad masked last lane-tile path and the bf16 fast path)
    N2, C2, L2 = 1, 8, 300
    x2 = jax.random.normal(k2, (N2, C2, L2), dtype=jnp.bfloat16)
    gamma2 = (0.05 * jax.random.uniform(k3, (C2, C2), dtype=jnp.float32)
              + 0.1 * jnp.eye(C2, dtype=jnp.float32))
    beta2 = jnp.linspace(0.5, 1.5, C2, dtype=jnp.float32)

    out2 = jax.block_until_ready(gdn_1d_pallas(x2, gamma2, beta2, inverse=False))
    ref2 = gdn_1d_reference(x2, gamma2, beta2, inverse=False)
    assert out2.shape == (N2, C2, L2) and out2.dtype == jnp.bfloat16
    assert jnp.allclose(out2.astype(jnp.float32), ref2.astype(jnp.float32),
                        atol=3e-2, rtol=3e-2), "GDN bf16/ragged mismatch vs reference"

    print("KERNEL_OK")
</pallas_src>

<mosaic_0001>
module attributes {stable_mosaic.version = 11 : i64} {
  func.func @gdn_kernel(%arg0: i32, %arg1: i32, %arg2: memref<1x4x16xf32, #tpu.memory_space<vmem>>, %arg3: memref<4x4xbf16, #tpu.memory_space<vmem>>, %arg4: memref<4x1xf32, #tpu.memory_space<vmem>>, %arg5: memref<1x4x16xf32, #tpu.memory_space<vmem>>) attributes {dimension_semantics = [#tpu.dimension_semantics<parallel>, #tpu.dimension_semantics<parallel>], iteration_bounds = array<i64: 2, 1>, scalar_prefetch = 0 : i64, scratch_operands = 0 : i64, tpu.core_type = #tpu.core_type<tc>, window_params = [{transform_indices = @transform_0, window_bounds = array<i64: 1, 4, 16>}, {pipeline_mode = #tpu.pipeline_mode<synchronous>, transform_indices = @transform_1, window_bounds = array<i64: 4, 4>}, {pipeline_mode = #tpu.pipeline_mode<synchronous>, transform_indices = @transform_2, window_bounds = array<i64: 4, 1>}, {transform_indices = @transform_3, window_bounds = array<i64: 1, 4, 16>}]} {
    %c0 = arith.constant 0 : index
    %c0_0 = arith.constant 0 : index
    %c0_1 = arith.constant 0 : index
    %0 = vector.load %arg2[%c0, %c0_0, %c0_1] : memref<1x4x16xf32, #tpu.memory_space<vmem>>, vector<1x4x16xf32>
    %1 = vector.shape_cast %0 : vector<1x4x16xf32> to vector<4x16xf32>
    %2 = arith.mulf %1, %1 : vector<4x16xf32>
    %3 = arith.truncf %2 : vector<4x16xf32> to vector<4x16xbf16>
    %c0_2 = arith.constant 0 : index
    %c0_3 = arith.constant 0 : index
    %4 = vector.load %arg3[%c0_2, %c0_3] : memref<4x4xbf16, #tpu.memory_space<vmem>>, vector<4x4xbf16>
    %cst = arith.constant dense<0.000000e+00> : vector<4x16xf32>
    %5 = tpu.matmul %4, %3, %cst {dimension_numbers = #tpu.dot_dimension_numbers<[1], [0], [0], [1], [0, 0, 1, 1], [], []>} : vector<4x4xbf16>, vector<4x16xbf16>, vector<4x16xf32> -> vector<4x16xf32>
    %c0_4 = arith.constant 0 : index
    %c0_5 = arith.constant 0 : index
    %6 = vector.load %arg4[%c0_4, %c0_5] : memref<4x1xf32, #tpu.memory_space<vmem>>, vector<4x1xf32>
    %7 = vector.broadcast %6 : vector<4x1xf32> to vector<4x16xf32>
    %8 = arith.addf %5, %7 : vector<4x16xf32>
    %9 = math.rsqrt %8 : vector<4x16xf32>
    %10 = arith.mulf %1, %9 : vector<4x16xf32>
    %c0_6 = arith.constant 0 : index
    %c0_7 = arith.constant 0 : index
    %c0_8 = arith.constant 0 : index
    %11 = vector.load %arg5[%c0_6, %c0_7, %c0_8] : memref<1x4x16xf32, #tpu.memory_space<vmem>>, vector<1x4x16xf32>
    %12 = vector.shape_cast %11 : vector<1x4x16xf32> to vector<4x16xf32>
    %13 = vector.shape_cast %10 : vector<4x16xf32> to vector<1x4x16xf32>
    tpu.vector_store %arg5[%c0_6, %c0_7, %c0_8], %13 {strides = array<i32>} : memref<1x4x16xf32, #tpu.memory_space<vmem>>, vector<1x4x16xf32>,
    return
  }
  func.func @transform_0(%arg0: i32, %arg1: i32) -> (i32, i32, i32) {
    %c0_i32 = arith.constant 0 : i32
    %c0_i32_0 = arith.constant 0 : i32
    return %arg0, %c0_i32, %arg1 : i32, i32, i32
  }
  func.func @transform_1(%arg0: i32, %arg1: i32) -> (i32, i32) {
    %c0_i32 = arith.constant 0 : i32
    %c0_i32_0 = arith.constant 0 : i32
    %c0_i32_1 = arith.constant 0 : i32
    return %c0_i32, %c0_i32_0 : i32, i32
  }
  func.func @transform_2(%arg0: i32, %arg1: i32) -> (i32, i32) {
    %c0_i32 = arith.constant 0 : i32
    %c0_i32_0 = arith.constant 0 : i32
    %c0_i32_1 = arith.constant 0 : i32
    return %c0_i32, %c0_i32_0 : i32, i32
  }
  func.func @transform_3(%arg0: i32, %arg1: i32) -> (i32, i32, i32) {
    %c0_i32 = arith.constant 0 : i32
    %c0_i32_0 = arith.constant 0 : i32
    return %arg0, %c0_i32, %arg1 : i32, i32, i32
  }
}

module attributes {stable_mosaic.version = 11 : i64} {
  func.func @gdn_kernel(%arg0: i32, %arg1: i32, %arg2: memref<1x4x16xf32, #tpu.memory_space<vmem>>, %arg3: memref<4x4xbf16, #tpu.memory_space<vmem>>, %arg4: memref<4x1xf32, #tpu.memory_space<vmem>>, %arg5: memref<1x4x16xf32, #tpu.memory_space<vmem>>) attributes {dimension_semantics = [#tpu.dimension_semantics<parallel>, #tpu.dimension_semantics<parallel>], iteration_bounds = array<i64: 2, 1>, scalar_prefetch = 0 : i64, scratch_operands = 0 : i64, tpu.core_type = #tpu.core_type<tc>, window_params = [{transform_indices = @transform_0, window_bounds = array<i64: 1, 4, 16>}, {pipeline_mode = #tpu.pipeline_mode<synchronous>, transform_indices = @transform_1, window_bounds = array<i64: 4, 4>}, {pipeline_mode = #tpu.pipeline_mode<synchronous>, transform_indices = @transform_2, window_bounds = array<i64: 4, 1>}, {transform_indices = @transform_3, window_bounds = array<i64: 1, 4, 16>}]} {
    %c0 = arith.constant 0 : index
    %c0_0 = arith.constant 0 : index
    %c0_1 = arith.constant 0 : index
    %0 = vector.load %arg2[%c0, %c0_0, %c0_1] : memref<1x4x16xf32, #tpu.memory_space<vmem>>, vector<1x4x16xf32>
    %1 = vector.shape_cast %0 : vector<1x4x16xf32> to vector<4x16xf32>
    %2 = arith.mulf %1, %1 : vector<4x16xf32>
    %3 = arith.truncf %2 : vector<4x16xf32> to vector<4x16xbf16>
    %c0_2 = arith.constant 0 : index
    %c0_3 = arith.constant 0 : index
    %4 = vector.load %arg3[%c0_2, %c0_3] : memref<4x4xbf16, #tpu.memory_space<vmem>>, vector<4x4xbf16>
    %cst = arith.constant dense<0.000000e+00> : vector<4x16xf32>
    %5 = tpu.matmul %4, %3, %cst {dimension_numbers = #tpu.dot_dimension_numbers<[1], [0], [0], [1], [0, 0, 1, 1], [], []>} : vector<4x4xbf16>, vector<4x16xbf16>, vector<4x16xf32> -> vector<4x16xf32>
    %c0_4 = arith.constant 0 : index
    %c0_5 = arith.constant 0 : index
    %6 = vector.load %arg4[%c0_4, %c0_5] : memref<4x1xf32, #tpu.memory_space<vmem>>, vector<4x1xf32>
    %7 = vector.broadcast %6 : vector<4x1xf32> to vector<4x16xf32>
    %8 = arith.addf %5, %7 : vector<4x16xf32>
    %9 = math.rsqrt %8 : vector<4x16xf32>
    %10 = arith.mulf %1, %9 : vector<4x16xf32>
    %c0_6 = arith.constant 0 : index
    %c0_7 = arith.constant 0 : index
    %c0_8 = arith.constant 0 : index
    %11 = vector.load %arg5[%c0_6, %c0_7, %c0_8] : memref<1x4x16xf32, #tpu.memory_space<vmem>>, vector<1x4x16xf32>
    %12 = vector.shape_cast %11 : vector<1x4x16xf32> to vector<4x16xf32>
    %13 = vector.shape_cast %10 : vector<4x16xf32> to vector<1x4x16xf32>
    tpu.vector_store %arg5[%c0_6, %c0_7, %c0_8], %13 {strides = array<i32>} : memref<1x4x16xf32, #tpu.memory_space<vmem>>, vector<1x4x16xf32>,
    return
  }
  func.func @transform_0(%arg0: i32, %arg1: i32) -> (i32, i32, i32) {
    %c0_i32 = arith.constant 0 : i32
    %c0_i32_0 = arith.constant 0 : i32
    return %arg0, %c0_i32, %arg1 : i32, i32, i32
  }
  func.func @transform_1(%arg0: i32, %arg1: i32) -> (i32, i32) {
    %c0_i32 = arith.constant 0 : i32
    %c0_i32_0 = arith.constant 0 : i32
    %c0_i32_1 = arith.constant 0 : i32
    return %c0_i32, %c0_i32_0 : i32, i32
  }
  func.func @transform_2(%arg0: i32, %arg1: i32) -> (i32, i32) {
    %c0_i32 = arith.constant 0 : i32
    %c0_i32_0 = arith.constant 0 : i32
    %c0_i32_1 = arith.constant 0 : i32
    return %c0_i32, %c0_i32_0 : i32, i32
  }
  func.func @transform_3(%arg0: i32, %arg1: i32) -> (i32, i32, i32) {
    %c0_i32 = arith.constant 0 : i32
    %c0_i32_0 = arith.constant 0 : i32
    return %arg0, %c0_i32, %arg1 : i32, i32, i32
  }
}

</mosaic_0001>

<llo_original>
// kernel: tpu_custom_call.1
$region0: #{tpu_custom_call.1}
  #allocation0 [shape = 'u32[]', space=smem, size = 0x4, offset = 0x4, fixed_abs, tag = 'smem constant byte address 0x4 - core index']
  #allocation1 [shape = 'u32[72,128]{1,0:T(1,128)}', space=vmem, size = 0x9000, scoped, tag = 'internal scratch']
  %s0 = inlined_call_operand.hbm [shape: f32[2,4,16], index: 0, kind: input, shape index: {}]
  %s1 = inlined_call_operand.vmem [shape: bf16[4,4], index: 1, kind: input, shape index: {}]
  %s2 = inlined_call_operand.vmem [shape: f32[4,1], index: 2, kind: input, shape index: {}]
  %s3 = inlined_call_operand.hbm [shape: f32[2,4,16], index: 3, kind: output, shape index: {}]
  %s4 = sld [smem:[#allocation0]]
  $region49: #{tpu_custom_call.1} parent=0
    _
  %s6 = ssub.s32 1, %s4
  %s7 = scalar_select 0, %s6, %s4
  $region1: #{tpu_custom_call.1} parent=0
    #allocation2 [shape = 'u8[4096]{0}', space=vmem, size = 0x1000, scoped, tag = 'input window, operand 0']
    #allocation3 [shape = 's32[2]{0}', space=sflag, size = 0x8, scoped, tag = 'scoped memory for tpu_custom_call.1']
    #allocation4 [shape = 's32[2]{0}', space=sflag, size = 0x8, scoped, tag = 'scoped memory for tpu_custom_call.1']
    #allocation5 [shape = 'u8[4096]{0}', space=vmem, size = 0x1000, scoped, tag = 'output window, operand 0']
    %8 = vsyncpa [#allocation3], 0
    %s9 = scalar_lea.sflag [#allocation3], 1
    %10 = vsyncpa %s9, 0
    %11 = vsyncpa [#allocation4], 0
    %s12 = scalar_lea.sflag [#allocation4], 1
    %13 = vsyncpa %s12, 0
    loop: start=0, step=1, limit=4
    $region2: #{tpu_custom_call.1} parent=1 // loop_pre_header
      _
    $region3: #{tpu_custom_call.1} parent=1 // loop_header
      %s15 = sphi 0, %s19
      %p16 = scmp.ge.s32.totalorder %s15, 4
      %s22 = sphi 0, %s34
      %s23 = sphi 0, %s30
      %s24 = sphi 0, %s22
      %s25 = sphi 0, %s23
      %s26 = sphi 0, %s24
      %s27 = sphi 0, %s25
      %s39 = sphi 0, %s41
      %s42 = sphi 0, %s39
      %s43 = sphi 0, %s42
      %s59 = sphi 0, %s43
      %s63 = sphi 0, %s63
      %s65 = sphi 0, %s63
      %s66 = sphi 0, %s65
      %s80 = sphi 0, %s66
      %s84 = sphi 0, %s84
      %s86 = sphi 0, %s84
      %s87 = sphi 0, %s86
      %s101 = sphi 0, %s87
      %s109 = sphi 0, %s111
      %s112 = sphi 0, %s109
      %s113 = sphi 0, %s112
      %s129 = sphi 0, %s113
    $region4: #{tpu_custom_call.1} parent=1 // loop_header_branch
      %18 = sbr.rel (%p16) target = $region8
    $region5: #{tpu_custom_call.1} parent=1 // loop_body
      %s20 = ssub.s32 %s15, 1
      %s21 = ssub.s32 %s15, 2
      %s28 = sadd.s32 1, %s23
      %p29 = scmp.ge.s32.totalorder %s28, 1
      %s30 = scalar_select %p29, 0, %s28
      %s31 = sadd.s32 1, %s22
      %s32 = scalar_select %p29, %s31, %s22
      %p33 = scmp.ge.s32.totalorder %s32, 2
      %s34 = scalar_select %p33, 0, %s32
      %s35 = ssub.s32 %s22, %s34
      %s36 = ssub.s32 %s23, %s30
      %s37 = sor.u32 %s35, %s36
      %p38 = scmp.eq.s32.totalorder %s37, 0
      %s40 = sadd.s32 %s39, 1
      %s41 = scalar_select %p38, %s39, %s40
      %p44 = pneg %p38
      %p45 = scmp.eq.s32.totalorder %s15, 1
      %p46 = por %p44, %p45
      %p47 = scmp.ne.s32.totalorder %s39, %s42
      %p48 = scmp.eq.s32.totalorder %s15, 0
      %p49 = por %p47, %p48
      %p50 = scmp.ne.s32.totalorder %s39, %s42
      %p51 = scmp.eq.s32.totalorder %s20, 1
      %p52 = por %p50, %p51
      %p53 = scmp.ne.s32.totalorder %s42, %s43
      %p54 = scmp.eq.s32.totalorder %s20, 0
      %p55 = por %p53, %p54
      %p56 = scmp.ne.s32.totalorder %s42, %s43
      %p57 = scmp.eq.s32.totalorder %s21, 1
      %p58 = por %p56, %p57
      %p60 = scmp.ne.s32.totalorder %s43, %s59
      %p61 = scmp.eq.s32.totalorder %s21, 0
      %p62 = por %p60, %p61
      %s64 = sadd.s32 %s63, 1
      %p67 = scmp.eq.s32.totalorder %s15, 1
      %p68 = scmp.ne.s32.totalorder %s63, %s65
      %p69 = scmp.eq.s32.totalorder %s15, 0
      %p70 = por %p68, %p69
      %p71 = scmp.ne.s32.totalorder %s63, %s65
      %p72 = scmp.eq.s32.totalorder %s20, 1
      %p73 = por %p71, %p72
      %p74 = scmp.ne.s32.totalorder %s65, %s66
      %p75 = scmp.eq.s32.totalorder %s20, 0
      %p76 = por %p74, %p75
      %p77 = scmp.ne.s32.totalorder %s65, %s66
      %p78 = scmp.eq.s32.totalorder %s21, 1
      %p79 = por %p77, %p78
      %p81 = scmp.ne.s32.totalorder %s66, %s80
      %p82 = scmp.eq.s32.totalorder %s21, 0
      %p83 = por %p81, %p82
      %s85 = sadd.s32 %s84, 1
      %p88 = scmp.eq.s32.totalorder %s15, 1
      %p89 = scmp.ne.s32.totalorder %s84, %s86
      %p90 = scmp.eq.s32.totalorder %s15, 0
      %p91 = por %p89, %p90
      %p92 = scmp.ne.s32.totalorder %s84, %s86
      %p93 = scmp.eq.s32.totalorder %s20, 1
      %p94 = por %p92, %p93
      %p95 = scmp.ne.s32.totalorder %s86, %s87
      %p96 = scmp.eq.s32.totalorder %s20, 0
      %p97 = por %p95, %p96
      %p98 = scmp.ne.s32.totalorder %s86, %s87
      %p99 = scmp.eq.s32.totalorder %s21, 1
      %p100 = por %p98, %p99
      %p102 = scmp.ne.s32.totalorder %s87, %s101
      %p103 = scmp.eq.s32.totalorder %s21, 0
      %p104 = por %p102, %p103
      %s105 = ssub.s32 %s22, %s34
      %s106 = ssub.s32 %s23, %s30
      %s107 = sor.u32 %s105, %s106
      %p108 = scmp.eq.s32.totalorder %s107, 0
      %s110 = sadd.s32 %s109, 1
      %s111 = scalar_select %p108, %s109, %s110
      %p114 = pneg %p108
      %p115 = scmp.eq.s32.totalorder %s15, 1
      %p116 = por %p114, %p115
      %p117 = scmp.ne.s32.totalorder %s109, %s112
      %p118 = scmp.eq.s32.totalorder %s15, 0
      %p119 = por %p117, %p118
      %p120 = scmp.ne.s32.totalorder %s109, %s112
      %p121 = scmp.eq.s32.totalorder %s20, 1
      %p122 = por %p120, %p121
      %p123 = scmp.ne.s32.totalorder %s112, %s113
      %p124 = scmp.eq.s32.totalorder %s20, 0
      %p125 = por %p123, %p124
      %p126 = scmp.ne.s32.totalorder %s112, %s113
      %p127 = scmp.eq.s32.totalorder %s21, 1
      %p128 = por %p126, %p127
      %p130 = scmp.ne.s32.totalorder %s113, %s129
      %p131 = scmp.eq.s32.totalorder %s21, 0
      %p132 = por %p130, %p131
      %p133 = scmp.le.s32.totalorder 1, %s15
      %p134 = scmp.lt.s32.totalorder %s15, 3
      %p135 = pnand %p133, %p134
      %p136 = pneg %p135
      // Predicated region
      $region9: #{tpu_custom_call.1} parent=5 // pred_check
        _
      $region10: #{tpu_custom_call.1} parent=5 // pred_check_branch
        %138 = sbr.rel (%p135) target = $region12
      $region11: #{tpu_custom_call.1} parent=5 // pred_region
        %s139 = ssub.s32 %s15, 1
        // Predicated region
        $region13: #{tpu_custom_call.1} parent=11 // pred_check
          %p140 = pneg %p76
        $region14: #{tpu_custom_call.1} parent=11 // pred_check_branch
          %142 = sbr.rel (%p140) target = $region16
        $region15: #{tpu_custom_call.1} parent=11 // pred_region
          _
        $region16: #{tpu_custom_call.1} parent=11 // pred_fallthru
          _
        // Predicated region
        $region17: #{tpu_custom_call.1} parent=11 // pred_check
          %p143 = pneg %p97
        $region18: #{tpu_custom_call.1} parent=11 // pred_check_branch
          %145 = sbr.rel (%p143) target = $region20
        $region19: #{tpu_custom_call.1} parent=11 // pred_region
          _
        $region20: #{tpu_custom_call.1} parent=11 // pred_fallthru
          _
      $region12: #{tpu_custom_call.1} parent=5 // pred_fallthru
        _
      %p146 = scmp.lt.s32.totalorder %s15, 2
      // Predicated region
      $region21: #{tpu_custom_call.1} parent=5 // pred_check
        %p147 = pneg %p146
      $region22: #{tpu_custom_call.1} parent=5 // pred_check_branch
        %149 = sbr.rel (%p147) target = $region24
      $region23: #{tpu_custom_call.1} parent=5 // pred_region
        // Predicated region
        $region25: #{tpu_custom_call.1} parent=23 // pred_check
          %p150 = pneg %p49
        $region26: #{tpu_custom_call.1} parent=23 // pred_check_branch
          %152 = sbr.rel (%p150) target = $region28
        $region27: #{tpu_custom_call.1} parent=23 // pred_region
          %s153 = sand.u32 %s39, 1
          %s154 = scalar_lea.sflag [#allocation3], %s153
          %s155 = sand.u32 %s39, 1
          %s156 = smul.addr %s155, 4
          %s157 = scalar_lea.vmem [#allocation2], %s156
          %159 = vsyncadd %s154, 0
          %s160 = sadd.s32 %s23, %s22
          %s161 = smul.addr %s160, 4
          %s162 = scalar_lea.hbm %s0, %s161
          %s164 = sshll.u32 %s162, 4
          %s165 = int_to_ptr.hbm [resolvable:$true] %s164
          %s166 = sshll.u32 %s157, 4
          %s167 = int_to_ptr.vmem [resolvable:$true] %s166
          %169 = dma.hbm_to_vmem [thread:$0]  %s165, 64, %s167, %s154
        $region28: #{tpu_custom_call.1} parent=23 // pred_fallthru
          _
      $region24: #{tpu_custom_call.1} parent=5 // pred_fallthru
        _
      %p170 = scmp.le.s32.totalorder 1, %s15
      %p171 = scmp.lt.s32.totalorder %s15, 3
      %p172 = pnand %p170, %p171
      %p173 = pneg %p172
      // Predicated region
      $region29: #{tpu_custom_call.1} parent=5 // pred_check
        _
      $region30: #{tpu_custom_call.1} parent=5 // pred_check_branch
        %175 = sbr.rel (%p172) target = $region32
      $region31: #{tpu_custom_call.1} parent=5 // pred_region
        %s176 = ssub.s32 %s15, 1
        %s177 = sand.u32 %s42, 1
        %s178 = scalar_lea.sflag [#allocation3], %s177
        %s179 = sand.u32 %s42, 1
        %s180 = smul.addr %s179, 4
        %s181 = scalar_lea.vmem [#allocation2], %s180
        // Predicated region
        $region33: #{tpu_custom_call.1} parent=31 // pred_check
          %p182 = pneg %p55
        $region34: #{tpu_custom_call.1} parent=31 // pred_check_branch
          %184 = sbr.rel (%p182) target = $region36
        $region35: #{tpu_custom_call.1} parent=31 // pred_region
          %186 = dma.done %s178, 64
        $region36: #{tpu_custom_call.1} parent=31 // pred_fallthru
          _
        %s187 = sand.u32 %s42, 1
        %s188 = scalar_lea.sflag [#allocation3], %s187
        %s189 = sand.u32 %s42, 1
        %s190 = smul.addr %s189, 4
        %s191 = scalar_lea.vmem [#allocation2], %s190
        %p192 = pneg %p55
        %p193 = pneg %p52
        %p194 = pneg %p76
        %p195 = pneg %p73
        %p196 = pneg %p97
        %p197 = pneg %p94
        %p198 = pneg %p125
        %p199 = pneg %p122
        %s200 = sand.u32 %s112, 1
        %s201 = scalar_lea.sflag [#allocation4], %s200
        %s202 = sand.u32 %s112, 1
        %s203 = smul.addr %s202, 4
        %s204 = scalar_lea.vmem [#allocation5], %s203
        %v206 = vld [vmem:[%s181] sm:$0xf]
        %v207 = vmul.f32 %v206, %v206
        %v208 = vpack.c.bf16 %v207, %v207
        %v209 = vld [vmem:[%s1] sm:$0x3]
        %v210 = vld [vmem:[%s2] sm:$0xf]
        %212 = vset.pattern.permute.xlu0 0
        %213 = vperm.xlu0 %212, %v210
        %v214 = vpop.permute.xlu0 %213
        %vm216 = vcmask 31744
        %v218 = vsel %vm216, %v209, 0
        %vm220 = vcmask 1041408
        %v222 = vsel %vm220, %v208, 0
        %224 = vmatpush.bf16.msra.mxu0 0
        %225 = vmatpush.bf16.msra.mxu0 0
        %226 = vmatpush.bf16.msra.mxu0 0
        %227 = vmatpush.bf16.msra.mxu0 0
        %228 = vmatpush.bf16.msra.mxu0 0
        %229 = vmatpush.bf16.msra.mxu0 0
        %230 = vmatpush.bf16.msra.mxu0 0
        %231 = vmatpush.bf16.msra.mxu0 %v222
        %232 = vmatmul.bf16.gmra.mxu0 %v218
        %v233 = vpop.f32.mrf.mxu0
        %v234 = vadd.f32 %v214, %v233
        %v235 = vpop.f32.mrf.mxu0
        %236 = vdwg.mxu0
        %v237 = vrsqrt.pop %v234
        %v238 = vmul.f32 %v237, %v234
        %v239 = vmul.f32 %v238, %v237
        %v240 = vmul.f32 0.5, %v239
        %v241 = vsub.f32 1.5, %v240
        %v242 = vmul.f32 %v237, %v241
        %vm243 = vweird.f32 %v234
        %vm244 = vweird.f32 %v237
        %vm245 = vmor %vm243, %vm244
        %v246 = vsel %vm245, %v237, %v242
        %v247 = vmul.f32 %v206, %v246
        %vm248 = vcmask 125952
        %249 = vst.msk [vmem:[%s204] sm:$0xf] %vm248, %v247
        %s250 = sand.u32 %s112, 1
        %s251 = scalar_lea.sflag [#allocation4], %s250
        %s252 = sand.u32 %s112, 1
        %s253 = smul.addr %s252, 4
        %s254 = scalar_lea.vmem [#allocation5], %s253
        // Predicated region
        $region37: #{tpu_custom_call.1} parent=31 // pred_check
          %p255 = pneg %p122
        $region38: #{tpu_custom_call.1} parent=31 // pred_check_branch
          %257 = sbr.rel (%p255) target = $region40
        $region39: #{tpu_custom_call.1} parent=31 // pred_region
          %259 = vsyncadd %s251, 0
          %s260 = sadd.s32 %s25, %s24
          %s261 = smul.addr %s260, 4
          %s262 = scalar_lea.hbm %s3, %s261
          %s264 = sshll.u32 %s254, 4
          %s265 = int_to_ptr.vmem [resolvable:$true] %s264
          %s266 = sshll.u32 %s262, 4
          %s267 = int_to_ptr.hbm [resolvable:$true] %s266
          %269 = dma.vmem_to_hbm [thread:$0]  %s265, 64, %s267, %s251
        $region40: #{tpu_custom_call.1} parent=31 // pred_fallthru
          _
      $region32: #{tpu_custom_call.1} parent=5 // pred_fallthru
        _
      %p270 = scmp.le.s32.totalorder 2, %s15
      // Predicated region
      $region41: #{tpu_custom_call.1} parent=5 // pred_check
        %p271 = pneg %p270
      $region42: #{tpu_custom_call.1} parent=5 // pred_check_branch
        %273 = sbr.rel (%p271) target = $region44
      $region43: #{tpu_custom_call.1} parent=5 // pred_region
        %s274 = ssub.s32 %s15, 2
        // Predicated region
        $region45: #{tpu_custom_call.1} parent=43 // pred_check
          %p275 = pneg %p128
        $region46: #{tpu_custom_call.1} parent=43 // pred_check_branch
          %277 = sbr.rel (%p275) target = $region48
        $region47: #{tpu_custom_call.1} parent=43 // pred_region
          %s278 = sand.u32 %s113, 1
          %s279 = scalar_lea.sflag [#allocation4], %s278
          %s280 = sand.u32 %s113, 1
          %s281 = smul.addr %s280, 4
          %s282 = scalar_lea.vmem [#allocation5], %s281
          %284 = dma.done %s279, 64
        $region48: #{tpu_custom_call.1} parent=43 // pred_fallthru
          _
      $region44: #{tpu_custom_call.1} parent=5 // pred_fallthru
        _
    $region6: #{tpu_custom_call.1} parent=1 // loop_footer
      %s19 = sadd.s32 1, %s15
    $region7: #{tpu_custom_call.1} parent=1 // loop_footer_branch
      %14 = sbr.rel target = $region3
    $region8: #{tpu_custom_call.1} parent=1 // loop_exit
      _
    %285 = vsyncpa [#allocation3], 1
    %s286 = scalar_lea.sflag [#allocation3], 1
    %287 = vsyncpa %s286, 1
    %288 = vsyncpa [#allocation4], 1
    %s289 = scalar_lea.sflag [#allocation4], 1
    %290 = vsyncpa %s289, 1

// kernel: tpu_custom_call.1
$region0: #{tpu_custom_call.1}
  #allocation0 [shape = 'u32[]', space=smem, size = 0x4, offset = 0x4, fixed_abs, tag = 'smem constant byte address 0x4 - core index']
  #allocation1 [shape = 'u32[72,128]{1,0:T(1,128)}', space=vmem, size = 0x9000, scoped, tag = 'internal scratch']
  %s0 = inlined_call_operand.hbm [shape: f32[2,4,16], index: 0, kind: input, shape index: {}]
  %s1 = inlined_call_operand.vmem [shape: bf16[4,4], index: 1, kind: input, shape index: {}]
  %s2 = inlined_call_operand.vmem [shape: f32[4,1], index: 2, kind: input, shape index: {}]
  %s3 = inlined_call_operand.hbm [shape: f32[2,4,16], index: 3, kind: output, shape index: {}]
  %s4 = sld [smem:[#allocation0]]
  $region49: #{tpu_custom_call.1} parent=0
    _
  %s6 = ssub.s32 1, %s4
  %s7 = scalar_select 0, %s6, %s4
  $region1: #{tpu_custom_call.1} parent=0
    #allocation2 [shape = 'u8[4096]{0}', space=vmem, size = 0x1000, scoped, tag = 'input window, operand 0']
    #allocation3 [shape = 's32[2]{0}', space=sflag, size = 0x8, scoped, tag = 'scoped memory for tpu_custom_call.1']
    #allocation4 [shape = 's32[2]{0}', space=sflag, size = 0x8, scoped, tag = 'scoped memory for tpu_custom_call.1']
    #allocation5 [shape = 'u8[4096]{0}', space=vmem, size = 0x1000, scoped, tag = 'output window, operand 0']
    %8 = vsyncpa [#allocation3], 0
    %s9 = scalar_lea.sflag [#allocation3], 1
    %10 = vsyncpa %s9, 0
    %11 = vsyncpa [#allocation4], 0
    %s12 = scalar_lea.sflag [#allocation4], 1
    %13 = vsyncpa %s12, 0
    loop: start=0, step=1, limit=4
    $region2: #{tpu_custom_call.1} parent=1 // loop_pre_header
      _
    $region3: #{tpu_custom_call.1} parent=1 // loop_header
      %s15 = sphi 0, %s19
      %p16 = scmp.ge.s32.totalorder %s15, 4
      %s22 = sphi 0, %s34
      %s23 = sphi 0, %s30
      %s24 = sphi 0, %s22
      %s25 = sphi 0, %s23
      %s26 = sphi 0, %s24
      %s27 = sphi 0, %s25
      %s39 = sphi 0, %s41
      %s42 = sphi 0, %s39
      %s43 = sphi 0, %s42
      %s59 = sphi 0, %s43
      %s63 = sphi 0, %s63
      %s65 = sphi 0, %s63
      %s66 = sphi 0, %s65
      %s80 = sphi 0, %s66
      %s84 = sphi 0, %s84
      %s86 = sphi 0, %s84
      %s87 = sphi 0, %s86
      %s101 = sphi 0, %s87
      %s109 = sphi 0, %s111
      %s112 = sphi 0, %s109
      %s113 = sphi 0, %s112
      %s129 = sphi 0, %s113
    $region4: #{tpu_custom_call.1} parent=1 // loop_header_branch
      %18 = sbr.rel (%p16) target = $region8
    $region5: #{tpu_custom_call.1} parent=1 // loop_body
      %s20 = ssub.s32 %s15, 1
      %s21 = ssub.s32 %s15, 2
      %s28 = sadd.s32 1, %s23
      %p29 = scmp.ge.s32.totalorder %s28, 1
      %s30 = scalar_select %p29, 0, %s28
      %s31 = sadd.s32 1, %s22
      %s32 = scalar_select %p29, %s31, %s22
      %p33 = scmp.ge.s32.totalorder %s32, 2
      %s34 = scalar_select %p33, 0, %s32
      %s35 = ssub.s32 %s22, %s34
      %s36 = ssub.s32 %s23, %s30
      %s37 = sor.u32 %s35, %s36
      %p38 = scmp.eq.s32.totalorder %s37, 0
      %s40 = sadd.s32 %s39, 1
      %s41 = scalar_select %p38, %s39, %s40
      %p44 = pneg %p38
      %p45 = scmp.eq.s32.totalorder %s15, 1
      %p46 = por %p44, %p45
      %p47 = scmp.ne.s32.totalorder %s39, %s42
      %p48 = scmp.eq.s32.totalorder %s15, 0
      %p49 = por %p47, %p48
      %p50 = scmp.ne.s32.totalorder %s39, %s42
      %p51 = scmp.eq.s32.totalorder %s20, 1
      %p52 = por %p50, %p51
      %p53 = scmp.ne.s32.totalorder %s42, %s43
      %p54 = scmp.eq.s32.totalorder %s20, 0
      %p55 = por %p53, %p54
      %p56 = scmp.ne.s32.totalorder %s42, %s43
      %p57 = scmp.eq.s32.totalorder %s21, 1
      %p58 = por %p56, %p57
      %p60 = scmp.ne.s32.totalorder %s43, %s59
      %p61 = scmp.eq.s32.totalorder %s21, 0
      %p62 = por %p60, %p61
      %s64 = sadd.s32 %s63, 1
      %p67 = scmp.eq.s32.totalorder %s15, 1
      %p68 = scmp.ne.s32.totalorder %s63, %s65
      %p69 = scmp.eq.s32.totalorder %s15, 0
      %p70 = por %p68, %p69
      %p71 = scmp.ne.s32.totalorder %s63, %s65
      %p72 = scmp.eq.s32.totalorder %s20, 1
      %p73 = por %p71, %p72
      %p74 = scmp.ne.s32.totalorder %s65, %s66
      %p75 = scmp.eq.s32.totalorder %s20, 0
      %p76 = por %p74, %p75
      %p77 = scmp.ne.s32.totalorder %s65, %s66
      %p78 = scmp.eq.s32.totalorder %s21, 1
      %p79 = por %p77, %p78
      %p81 = scmp.ne.s32.totalorder %s66, %s80
      %p82 = scmp.eq.s32.totalorder %s21, 0
      %p83 = por %p81, %p82
      %s85 = sadd.s32 %s84, 1
      %p88 = scmp.eq.s32.totalorder %s15, 1
      %p89 = scmp.ne.s32.totalorder %s84, %s86
      %p90 = scmp.eq.s32.totalorder %s15, 0
      %p91 = por %p89, %p90
      %p92 = scmp.ne.s32.totalorder %s84, %s86
      %p93 = scmp.eq.s32.totalorder %s20, 1
      %p94 = por %p92, %p93
      %p95 = scmp.ne.s32.totalorder %s86, %s87
      %p96 = scmp.eq.s32.totalorder %s20, 0
      %p97 = por %p95, %p96
      %p98 = scmp.ne.s32.totalorder %s86, %s87
      %p99 = scmp.eq.s32.totalorder %s21, 1
      %p100 = por %p98, %p99
      %p102 = scmp.ne.s32.totalorder %s87, %s101
      %p103 = scmp.eq.s32.totalorder %s21, 0
      %p104 = por %p102, %p103
      %s105 = ssub.s32 %s22, %s34
      %s106 = ssub.s32 %s23, %s30
      %s107 = sor.u32 %s105, %s106
      %p108 = scmp.eq.s32.totalorder %s107, 0
      %s110 = sadd.s32 %s109, 1
      %s111 = scalar_select %p108, %s109, %s110
      %p114 = pneg %p108
      %p115 = scmp.eq.s32.totalorder %s15, 1
      %p116 = por %p114, %p115
      %p117 = scmp.ne.s32.totalorder %s109, %s112
      %p118 = scmp.eq.s32.totalorder %s15, 0
      %p119 = por %p117, %p118
      %p120 = scmp.ne.s32.totalorder %s109, %s112
      %p121 = scmp.eq.s32.totalorder %s20, 1
      %p122 = por %p120, %p121
      %p123 = scmp.ne.s32.totalorder %s112, %s113
      %p124 = scmp.eq.s32.totalorder %s20, 0
      %p125 = por %p123, %p124
      %p126 = scmp.ne.s32.totalorder %s112, %s113
      %p127 = scmp.eq.s32.totalorder %s21, 1
      %p128 = por %p126, %p127
      %p130 = scmp.ne.s32.totalorder %s113, %s129
      %p131 = scmp.eq.s32.totalorder %s21, 0
      %p132 = por %p130, %p131
      %p133 = scmp.le.s32.totalorder 1, %s15
      %p134 = scmp.lt.s32.totalorder %s15, 3
      %p135 = pnand %p133, %p134
      %p136 = pneg %p135
      // Predicated region
      $region9: #{tpu_custom_call.1} parent=5 // pred_check
        _
      $region10: #{tpu_custom_call.1} parent=5 // pred_check_branch
        %138 = sbr.rel (%p135) target = $region12
      $region11: #{tpu_custom_call.1} parent=5 // pred_region
        %s139 = ssub.s32 %s15, 1
        // Predicated region
        $region13: #{tpu_custom_call.1} parent=11 // pred_check
          %p140 = pneg %p76
        $region14: #{tpu_custom_call.1} parent=11 // pred_check_branch
          %142 = sbr.rel (%p140) target = $region16
        $region15: #{tpu_custom_call.1} parent=11 // pred_region
          _
        $region16: #{tpu_custom_call.1} parent=11 // pred_fallthru
          _
        // Predicated region
        $region17: #{tpu_custom_call.1} parent=11 // pred_check
          %p143 = pneg %p97
        $region18: #{tpu_custom_call.1} parent=11 // pred_check_branch
          %145 = sbr.rel (%p143) target = $region20
        $region19: #{tpu_custom_call.1} parent=11 // pred_region
          _
        $region20: #{tpu_custom_call.1} parent=11 // pred_fallthru
          _
      $region12: #{tpu_custom_call.1} parent=5 // pred_fallthru
        _
      %p146 = scmp.lt.s32.totalorder %s15, 2
      // Predicated region
      $region21: #{tpu_custom_call.1} parent=5 // pred_check
        %p147 = pneg %p146
      $region22: #{tpu_custom_call.1} parent=5 // pred_check_branch
        %149 = sbr.rel (%p147) target = $region24
      $region23: #{tpu_custom_call.1} parent=5 // pred_region
        // Predicated region
        $region25: #{tpu_custom_call.1} parent=23 // pred_check
          %p150 = pneg %p49
        $region26: #{tpu_custom_call.1} parent=23 // pred_check_branch
          %152 = sbr.rel (%p150) target = $region28
        $region27: #{tpu_custom_call.1} parent=23 // pred_region
          %s153 = sand.u32 %s39, 1
          %s154 = scalar_lea.sflag [#allocation3], %s153
          %s155 = sand.u32 %s39, 1
          %s156 = smul.addr %s155, 4
          %s157 = scalar_lea.vmem [#allocation2], %s156
          %159 = vsyncadd %s154, 0
          %s160 = sadd.s32 %s23, %s22
          %s161 = smul.addr %s160, 4
          %s162 = scalar_lea.hbm %s0, %s161
          %s164 = sshll.u32 %s162, 4
          %s165 = int_to_ptr.hbm [resolvable:$true] %s164
          %s166 = sshll.u32 %s157, 4
          %s167 = int_to_ptr.vmem [resolvable:$true] %s166
          %169 = dma.hbm_to_vmem [thread:$0]  %s165, 64, %s167, %s154
        $region28: #{tpu_custom_call.1} parent=23 // pred_fallthru
          _
      $region24: #{tpu_custom_call.1} parent=5 // pred_fallthru
        _
      %p170 = scmp.le.s32.totalorder 1, %s15
      %p171 = scmp.lt.s32.totalorder %s15, 3
      %p172 = pnand %p170, %p171
      %p173 = pneg %p172
      // Predicated region
      $region29: #{tpu_custom_call.1} parent=5 // pred_check
        _
      $region30: #{tpu_custom_call.1} parent=5 // pred_check_branch
        %175 = sbr.rel (%p172) target = $region32
      $region31: #{tpu_custom_call.1} parent=5 // pred_region
        %s176 = ssub.s32 %s15, 1
        %s177 = sand.u32 %s42, 1
        %s178 = scalar_lea.sflag [#allocation3], %s177
        %s179 = sand.u32 %s42, 1
        %s180 = smul.addr %s179, 4
        %s181 = scalar_lea.vmem [#allocation2], %s180
        // Predicated region
        $region33: #{tpu_custom_call.1} parent=31 // pred_check
          %p182 = pneg %p55
        $region34: #{tpu_custom_call.1} parent=31 // pred_check_branch
          %184 = sbr.rel (%p182) target = $region36
        $region35: #{tpu_custom_call.1} parent=31 // pred_region
          %186 = dma.done %s178, 64
        $region36: #{tpu_custom_call.1} parent=31 // pred_fallthru
          _
        %s187 = sand.u32 %s42, 1
        %s188 = scalar_lea.sflag [#allocation3], %s187
        %s189 = sand.u32 %s42, 1
        %s190 = smul.addr %s189, 4
        %s191 = scalar_lea.vmem [#allocation2], %s190
        %p192 = pneg %p55
        %p193 = pneg %p52
        %p194 = pneg %p76
        %p195 = pneg %p73
        %p196 = pneg %p97
        %p197 = pneg %p94
        %p198 = pneg %p125
        %p199 = pneg %p122
        %s200 = sand.u32 %s112, 1
        %s201 = scalar_lea.sflag [#allocation4], %s200
        %s202 = sand.u32 %s112, 1
        %s203 = smul.addr %s202, 4
        %s204 = scalar_lea.vmem [#allocation5], %s203
        %v206 = vld [vmem:[%s181] sm:$0xf]
        %v207 = vmul.f32 %v206, %v206
        %v208 = vpack.c.bf16 %v207, %v207
        %v209 = vld [vmem:[%s1] sm:$0x3]
        %v210 = vld [vmem:[%s2] sm:$0xf]
        %212 = vset.pattern.permute.xlu0 0
        %213 = vperm.xlu0 %212, %v210
        %v214 = vpop.permute.xlu0 %213
        %vm216 = vcmask 31744
        %v218 = vsel %vm216, %v209, 0
        %vm220 = vcmask 1041408
        %v222 = vsel %vm220, %v208, 0
        %224 = vmatpush.bf16.msra.mxu0 0
        %225 = vmatpush.bf16.msra.mxu0 0
        %226 = vmatpush.bf16.msra.mxu0 0
        %227 = vmatpush.bf16.msra.mxu0 0
        %228 = vmatpush.bf16.msra.mxu0 0
        %229 = vmatpush.bf16.msra.mxu0 0
        %230 = vmatpush.bf16.msra.mxu0 0
        %231 = vmatpush.bf16.msra.mxu0 %v222
        %232 = vmatmul.bf16.gmra.mxu0 %v218
        %v233 = vpop.f32.mrf.mxu0
        %v234 = vadd.f32 %v214, %v233
        %v235 = vpop.f32.mrf.mxu0
        %236 = vdwg.mxu0
        %v237 = vrsqrt.pop %v234
        %v238 = vmul.f32 %v237, %v234
        %v239 = vmul.f32 %v238, %v237
        %v240 = vmul.f32 0.5, %v239
        %v241 = vsub.f32 1.5, %v240
        %v242 = vmul.f32 %v237, %v241
        %vm243 = vweird.f32 %v234
        %vm244 = vweird.f32 %v237
        %vm245 = vmor %vm243, %vm244
        %v246 = vsel %vm245, %v237, %v242
        %v247 = vmul.f32 %v206, %v246
        %vm248 = vcmask 125952
        %249 = vst.msk [vmem:[%s204] sm:$0xf] %vm248, %v247
        %s250 = sand.u32 %s112, 1
        %s251 = scalar_lea.sflag [#allocation4], %s250
        %s252 = sand.u32 %s112, 1
        %s253 = smul.addr %s252, 4
        %s254 = scalar_lea.vmem [#allocation5], %s253
        // Predicated region
        $region37: #{tpu_custom_call.1} parent=31 // pred_check
          %p255 = pneg %p122
        $region38: #{tpu_custom_call.1} parent=31 // pred_check_branch
          %257 = sbr.rel (%p255) target = $region40
        $region39: #{tpu_custom_call.1} parent=31 // pred_region
          %259 = vsyncadd %s251, 0
          %s260 = sadd.s32 %s25, %s24
          %s261 = smul.addr %s260, 4
          %s262 = scalar_lea.hbm %s3, %s261
          %s264 = sshll.u32 %s254, 4
          %s265 = int_to_ptr.vmem [resolvable:$true] %s264
          %s266 = sshll.u32 %s262, 4
          %s267 = int_to_ptr.hbm [resolvable:$true] %s266
          %269 = dma.vmem_to_hbm [thread:$0]  %s265, 64, %s267, %s251
        $region40: #{tpu_custom_call.1} parent=31 // pred_fallthru
          _
      $region32: #{tpu_custom_call.1} parent=5 // pred_fallthru
        _
      %p270 = scmp.le.s32.totalorder 2, %s15
      // Predicated region
      $region41: #{tpu_custom_call.1} parent=5 // pred_check
        %p271 = pneg %p270
      $region42: #{tpu_custom_call.1} parent=5 // pred_check_branch
        %273 = sbr.rel (%p271) target = $region44
      $region43: #{tpu_custom_call.1} parent=5 // pred_region
        %s274 = ssub.s32 %s15, 2
        // Predicated region
        $region45: #{tpu_custom_call.1} parent=43 // pred_check
          %p275 = pneg %p128
        $region46: #{tpu_custom_call.1} parent=43 // pred_check_branch
          %277 = sbr.rel (%p275) target = $region48
        $region47: #{tpu_custom_call.1} parent=43 // pred_region
          %s278 = sand.u32 %s113, 1
          %s279 = scalar_lea.sflag [#allocation4], %s278
          %s280 = sand.u32 %s113, 1
          %s281 = smul.addr %s280, 4
          %s282 = scalar_lea.vmem [#allocation5], %s281
          %284 = dma.done %s279, 64
        $region48: #{tpu_custom_call.1} parent=43 // pred_fallthru
          _
      $region44: #{tpu_custom_call.1} parent=5 // pred_fallthru
        _
    $region6: #{tpu_custom_call.1} parent=1 // loop_footer
      %s19 = sadd.s32 1, %s15
    $region7: #{tpu_custom_call.1} parent=1 // loop_footer_branch
      %14 = sbr.rel target = $region3
    $region8: #{tpu_custom_call.1} parent=1 // loop_exit
      _
    %285 = vsyncpa [#allocation3], 1
    %s286 = scalar_lea.sflag [#allocation3], 1
    %287 = vsyncpa %s286, 1
    %288 = vsyncpa [#allocation4], 1
    %s289 = scalar_lea.sflag [#allocation4], 1
    %290 = vsyncpa %s289, 1

</llo_original>
